<compile_context>
chip_gen: v5e
topology: v5e:2x2
jax: 0.10.0
libtpu: 0.0.40
codegen_flags: <defaults>
</compile_context>

<pallas_src>
import functools

import jax
import jax.numpy as jnp
from jax.experimental import pallas as pl
from jax.experimental.pallas import tpu as pltpu


# ---------------------------------------------------------------------------
# Kernel
# ---------------------------------------------------------------------------
def _swiglu_mlp_kernel(x_ref, w13_ref, w2_ref, o_ref, acc_ref, *, tile_f):
    """Grid = (token tiles, ffn tiles).  The ffn axis is the reduction for the w2 matmul.

    x_ref:   (tile_t, H)
    w13_ref: (H, 2*tile_f)  -- cols [0:tile_f) = W1 block, [tile_f:2*tile_f) = W3 block
    w2_ref:  (tile_f, H)
    o_ref:   (tile_t, H)
    acc_ref: (tile_t, H) f32 accumulator, resident across the ffn (reduction) axis
    """
    j = pl.program_id(1)

    @pl.when(j == 0)
    def _():
        acc_ref[...] = jnp.zeros_like(acc_ref)

    x = x_ref[...]                                                        # (tt, H)
    # One fused, full-width matmul covering both the gate (W1) and up (W3) projections.
    fused = jnp.dot(x, w13_ref[...], preferred_element_type=jnp.float32)  # (tt, 2*tf)
    gate = fused[:, :tile_f]
    up = fused[:, tile_f:]
    h = (jax.nn.silu(gate) * up).astype(x.dtype)                          # (tt, tf)
    acc_ref[...] += jnp.dot(h, w2_ref[...], preferred_element_type=jnp.float32)

    @pl.when(j == pl.num_programs(1) - 1)
    def _():
        o_ref[...] = acc_ref[...].astype(o_ref.dtype)


# ---------------------------------------------------------------------------
# Chip / tile helpers
# ---------------------------------------------------------------------------
def _tpu_vmem_capacity_bytes():
    """Physical per-TensorCore VMEM; conservative fallback if the query is unavailable."""
    try:
        return int(pltpu.get_tpu_info().vmem_capacity_bytes)
    except Exception:
        return 64 << 20  # assume the smallest (v7x-class) VMEM


def _pick_tile(total, target, unit):
    """Largest multiple of `unit` that divides `total` and is <= target; else the full extent."""
    target = max(1, min(target, total))
    if total % unit == 0 and target >= unit:
        t = (target // unit) * unit
        while t >= unit and total % t:
            t -= unit
        if t >= unit:
            return t
    return total  # full extent is always a legal block shape


# ---------------------------------------------------------------------------
# One-time weight preparation (call at weight-load time, NOT per forward)
# ---------------------------------------------------------------------------
def prepare_weights(w1, w2, w3, *, tile_f=None):
    """Convert PyTorch-layout weights to the kernel layout.

    w1, w3: (F, H)  (nn.Linear(hidden, ffn).weight)
    w2:     (H, F)  (nn.Linear(ffn, hidden).weight)
    Returns (w13_blocks: (F//tile_f, H, 2*tile_f), w2_t: (F, H), tile_f).
    """
    F, H = w1.shape
    if tile_f is None:
        vmem_cap = _tpu_vmem_capacity_bytes()
        tile_f = _pick_tile(F, 512 if vmem_cap <= (64 << 20) else 1024, unit=128)
    assert F % tile_f == 0, "ffn_dim must be divisible by tile_f"
    nf = F // tile_f

    w1_t = w1.T  # (H, F)
    w3_t = w3.T  # (H, F)
    w2_t = w2.T  # (F, H)
    # Interleave W1/W3 per ffn block, then make it block-major so each (H, 2*tile_f) weight
    # tile is one contiguous chunk in HBM (single-descriptor DMA).
    w13 = jnp.concatenate(
        [w1_t.reshape(H, nf, tile_f), w3_t.reshape(H, nf, tile_f)], axis=-1
    )                                            # (H, nf, 2*tile_f)
    w13_blocks = jnp.transpose(w13, (1, 0, 2))   # (nf, H, 2*tile_f)
    return w13_blocks, w2_t, tile_f


# ---------------------------------------------------------------------------
# Forward wrapper (hot path)
# ---------------------------------------------------------------------------
def mixtral_mlp(x, w13_blocks, w2_t, *, tile_t=None):
    """x: (T, H); w13_blocks: (F//tile_f, H, 2*tile_f); w2_t: (F, H). Returns (T, H)."""
    T, H = x.shape
    nf, H2, two_tf = w13_blocks.shape
    assert H2 == H and two_tf % 2 == 0
    tile_f = two_tf // 2
    F = nf * tile_f
    assert w2_t.shape == (F, H)
    assert H % 128 == 0, "hidden_dim must be a multiple of the 128-wide lane axis"

    vmem_cap = _tpu_vmem_capacity_bytes()

    if tile_t is None:
        # v7x (64 MiB VMEM/TC, ~3.2 TB/s HBM): ~512 tokens already crosses the compute
        # roofline; v5e/v6e (128 MiB): go to ~1024 to clear the bf16 roofline on v6e.
        target = 512 if vmem_cap <= (64 << 20) else 1024
        # Leave >= 2 token tiles so the "parallel" axis can feed both TensorCores.
        target = min(target, max(T // 2, 1))
        tile_t = _pick_tile(T, target, unit=8)
    tile_t = min(tile_t, T)
    assert T % tile_t == 0, "T must be divisible by tile_t"

    grid = (T // tile_t, nf)
    dsize = jnp.dtype(x.dtype).itemsize

    # --- scoped-VMEM budget ---------------------------------------------------------------
    # Double-buffered I/O tiles (x, w13, w2, out) + resident f32 accumulator + in-kernel f32
    # temporaries (fused matmul result, gate/up/h) + compiler internal scratch, capped at the
    # physical per-core VMEM minus 8 MiB headroom.
    tile_io_bytes = (tile_t * H + H * 2 * tile_f + tile_f * H + tile_t * H) * dsize
    acc_bytes = tile_t * H * 4
    tmp_bytes = tile_t * (2 * tile_f) * 4 + 3 * tile_t * tile_f * 4
    vmem_need = 2 * tile_io_bytes + acc_bytes + tmp_bytes + (4 << 20)
    vmem_cap_budget = max(vmem_cap - (8 << 20), 16 << 20)
    vmem_limit = int(min(max(vmem_need, 32 << 20), vmem_cap_budget))

    # --- advisory cost estimate -------------------------------------------------------------
    weight_passes = T // tile_t  # weights re-streamed once per token tile
    cost = pl.CostEstimate(
        flops=6 * T * H * F,
        transcendentals=T * F,
        bytes_accessed=(x.size + T * H) * dsize
        + (w13_blocks.size + w2_t.size) * dsize * weight_passes,
    )

    kernel = functools.partial(_swiglu_mlp_kernel, tile_f=tile_f)

    return pl.pallas_call(
        kernel,
        out_shape=jax.ShapeDtypeStruct((T, H), x.dtype),
        grid_spec=pltpu.PrefetchScalarGridSpec(
            num_scalar_prefetch=0,
            grid=grid,
            in_specs=[
                pl.BlockSpec((tile_t, H), lambda i, j: (i, 0)),            # x token tile
                pl.BlockSpec((None, H, 2 * tile_f), lambda i, j: (j, 0, 0)),  # fused W1|W3 block
                pl.BlockSpec((tile_f, H), lambda i, j: (j, 0)),            # W2 row block
            ],
            out_specs=pl.BlockSpec((tile_t, H), lambda i, j: (i, 0)),
            scratch_shapes=[pltpu.VMEM((tile_t, H), jnp.float32)],
        ),
        compiler_params=pltpu.CompilerParams(
            dimension_semantics=("parallel", "arbitrary"),
            vmem_limit_bytes=vmem_limit,
        ),
        cost_estimate=cost,
    )(x, w13_blocks, w2_t)


def mixtral_mlp_ref(x, w1, w2, w3):
    h = jax.nn.silu(x @ w1.T) * (x @ w3.T)
    return h @ w2.T


# ---------------------------------------------------------------------------
# Self-test
# ---------------------------------------------------------------------------
if __name__ == "__main__":
    # Small config: batch=2, seq=8 -> T=16 tokens; hidden=128, intermediate(ffn)=512.
    # Explicit small tiles exercise both the parallel (token) and reduction (ffn) grid axes.
    batch, seq = 2, 8
    hidden_dim = 128
    ffn_dim = 512

    key = jax.random.PRNGKey(0)
    kx, k1, k2, k3 = jax.random.split(key, 4)

    x = jax.random.normal(kx, (batch, seq, hidden_dim), dtype=jnp.float32)

    # nn.Linear weight shapes are (out_features, in_features).
    scale1 = 1.0 / jnp.sqrt(hidden_dim)
    scale2 = 1.0 / jnp.sqrt(ffn_dim)
    w1 = jax.random.uniform(k1, (ffn_dim, hidden_dim), jnp.float32, -scale1, scale1)
    w2 = jax.random.uniform(k2, (hidden_dim, ffn_dim), jnp.float32, -scale2, scale2)
    w3 = jax.random.uniform(k3, (ffn_dim, hidden_dim), jnp.float32, -scale1, scale1)

    # One-time weight preparation (load time, outside the per-call hot path).
    w13_blocks, w2_t, tile_f = prepare_weights(w1, w2, w3, tile_f=256)

    x_flat = x.reshape(batch * seq, hidden_dim)

    out = mixtral_mlp(x_flat, w13_blocks, w2_t, tile_t=8)
    out = jax.block_until_ready(out).reshape(batch, seq, hidden_dim)

    ref = mixtral_mlp_ref(x_flat, w1, w2, w3).reshape(batch, seq, hidden_dim)
    assert out.shape == (batch, seq, hidden_dim)
    assert jnp.allclose(out, ref, atol=1e-4, rtol=1e-4), "mismatch vs reference"

    print("KERNEL_OK")
</pallas_src>

<mosaic_0001>
module attributes {stable_mosaic.version = 11 : i64} {
  func.func @_swiglu_mlp_kernel(%arg0: i32, %arg1: i32, %arg2: memref<8x128xf32, #tpu.memory_space<vmem>>, %arg3: memref<1x128x512xf32, #tpu.memory_space<vmem>>, %arg4: memref<256x128xf32, #tpu.memory_space<vmem>>, %arg5: memref<8x128xf32, #tpu.memory_space<vmem>>, %arg6: memref<8x128xf32, #tpu.memory_space<vmem>>) attributes {dimension_semantics = [#tpu.dimension_semantics<parallel>, #tpu.dimension_semantics<arbitrary>], iteration_bounds = array<i64: 2, 2>, scalar_prefetch = 0 : i64, scratch_operands = 1 : i64, tpu.core_type = #tpu.core_type<tc>, window_params = [{transform_indices = @transform_0, window_bounds = array<i64: 8, 128>}, {transform_indices = @transform_1, window_bounds = array<i64: 1, 128, 512>}, {transform_indices = @transform_2, window_bounds = array<i64: 256, 128>}, {transform_indices = @transform_3, window_bounds = array<i64: 8, 128>}]} {
    %c0_i32 = arith.constant 0 : i32
    %0 = arith.cmpi eq, %arg1, %c0_i32 : i32
    %1 = arith.extui %0 : i1 to i32
    %c0_i32_0 = arith.constant 0 : i32
    %2 = arith.cmpi ne, %1, %c0_i32_0 : i32
    scf.if %2 {
      %cst_14 = arith.constant 0.000000e+00 : f32
      %24 = vector.broadcast %cst_14 : f32 to vector<8x128xf32>
      %c0_15 = arith.constant 0 : index
      %c0_16 = arith.constant 0 : index
      %25 = vector.load %arg6[%c0_15, %c0_16] : memref<8x128xf32, #tpu.memory_space<vmem>>, vector<8x128xf32>
      tpu.vector_store %arg6[%c0_15, %c0_16], %24 {strides = array<i32>} : memref<8x128xf32, #tpu.memory_space<vmem>>, vector<8x128xf32>,
    } else {
    }
    %c0 = arith.constant 0 : index
    %c0_1 = arith.constant 0 : index
    %3 = vector.load %arg2[%c0, %c0_1] : memref<8x128xf32, #tpu.memory_space<vmem>>, vector<8x128xf32>
    %c0_2 = arith.constant 0 : index
    %c0_3 = arith.constant 0 : index
    %c0_4 = arith.constant 0 : index
    %4 = vector.load %arg3[%c0_2, %c0_3, %c0_4] : memref<1x128x512xf32, #tpu.memory_space<vmem>>, vector<1x128x512xf32>
    %5 = vector.shape_cast %4 : vector<1x128x512xf32> to vector<128x512xf32>
    %cst = arith.constant dense<0.000000e+00> : vector<8x512xf32>
    %6 = tpu.matmul %3, %5, %cst {dimension_numbers = #tpu.dot_dimension_numbers<[1], [0], [0], [1], [0, 0, 1, 1], [], []>} : vector<8x128xf32>, vector<128x512xf32>, vector<8x512xf32> -> vector<8x512xf32>
    %7 = vector.extract_strided_slice %6 {offsets = [0, 0], sizes = [8, 256], strides = [1, 1]} : vector<8x512xf32> to vector<8x256xf32>
    %8 = vector.extract_strided_slice %6 {offsets = [0, 256], sizes = [8, 256], strides = [1, 1]} : vector<8x512xf32> to vector<8x256xf32>
    %9 = arith.negf %7 : vector<8x256xf32>
    %10 = math.exp %9 : vector<8x256xf32>
    %cst_5 = arith.constant 1.000000e+00 : f32
    %11 = vector.broadcast %cst_5 : f32 to vector<8x256xf32>
    %12 = arith.addf %11, %10 : vector<8x256xf32>
    %13 = arith.divf %11, %12 : vector<8x256xf32>
    %14 = arith.mulf %7, %13 : vector<8x256xf32>
    %15 = arith.mulf %14, %8 : vector<8x256xf32>
    %c0_6 = arith.constant 0 : index
    %c0_7 = arith.constant 0 : index
    %16 = vector.load %arg6[%c0_6, %c0_7] : memref<8x128xf32, #tpu.memory_space<vmem>>, vector<8x128xf32>
    %c0_8 = arith.constant 0 : index
    %c0_9 = arith.constant 0 : index
    %17 = vector.load %arg4[%c0_8, %c0_9] : memref<256x128xf32, #tpu.memory_space<vmem>>, vector<256x128xf32>
    %cst_10 = arith.constant dense<0.000000e+00> : vector<8x128xf32>
    %18 = tpu.matmul %15, %17, %cst_10 {dimension_numbers = #tpu.dot_dimension_numbers<[1], [0], [0], [1], [0, 0, 1, 1], [], []>} : vector<8x256xf32>, vector<256x128xf32>, vector<8x128xf32> -> vector<8x128xf32>
    %19 = arith.addf %16, %18 : vector<8x128xf32>
    %c0_11 = arith.constant 0 : index
    %c0_12 = arith.constant 0 : index
    %20 = vector.load %arg6[%c0_11, %c0_12] : memref<8x128xf32, #tpu.memory_space<vmem>>, vector<8x128xf32>
    tpu.vector_store %arg6[%c0_11, %c0_12], %19 {strides = array<i32>} : memref<8x128xf32, #tpu.memory_space<vmem>>, vector<8x128xf32>,
    %c1_i32 = arith.constant 1 : i32
    %21 = arith.cmpi eq, %arg1, %c1_i32 : i32
    %22 = arith.extui %21 : i1 to i32
    %c0_i32_13 = arith.constant 0 : i32
    %23 = arith.cmpi ne, %22, %c0_i32_13 : i32
    scf.if %23 {
      %c0_14 = arith.constant 0 : index
      %c0_15 = arith.constant 0 : index
      %24 = vector.load %arg6[%c0_14, %c0_15] : memref<8x128xf32, #tpu.memory_space<vmem>>, vector<8x128xf32>
      %c0_16 = arith.constant 0 : index
      %c0_17 = arith.constant 0 : index
      %25 = vector.load %arg5[%c0_16, %c0_17] : memref<8x128xf32, #tpu.memory_space<vmem>>, vector<8x128xf32>
      tpu.vector_store %arg5[%c0_16, %c0_17], %24 {strides = array<i32>} : memref<8x128xf32, #tpu.memory_space<vmem>>, vector<8x128xf32>,
    } else {
    }
    return
  }
  func.func @transform_0(%arg0: i32, %arg1: i32) -> (i32, i32) {
    %c0_i32 = arith.constant 0 : i32
    %c0_i32_0 = arith.constant 0 : i32
    return %arg0, %c0_i32 : i32, i32
  }
  func.func @transform_1(%arg0: i32, %arg1: i32) -> (i32, i32, i32) {
    %c0_i32 = arith.constant 0 : i32
    %c0_i32_0 = arith.constant 0 : i32
    %c0_i32_1 = arith.constant 0 : i32
    return %arg1, %c0_i32, %c0_i32_0 : i32, i32, i32
  }
  func.func @transform_2(%arg0: i32, %arg1: i32) -> (i32, i32) {
    %c0_i32 = arith.constant 0 : i32
    %c0_i32_0 = arith.constant 0 : i32
    return %arg1, %c0_i32 : i32, i32
  }
  func.func @transform_3(%arg0: i32, %arg1: i32) -> (i32, i32) {
    %c0_i32 = arith.constant 0 : i32
    %c0_i32_0 = arith.constant 0 : i32
    return %arg0, %c0_i32 : i32, i32
  }
}

</mosaic_0001>

<llo_original>
// kernel: tpu_custom_call.1
$region0: #{tpu_custom_call.1}
  #allocation0 [shape = 'u32[]', space=smem, size = 0x4, offset = 0x4, fixed_abs, tag = 'smem constant byte address 0x4 - core index']
  #allocation1 [shape = 'u32[72,128]{1,0:T(1,128)}', space=vmem, size = 0x9000, scoped, tag = 'internal scratch']
  #allocation2 [shape = 'f32[8,128]{1,0:T(8,128)}', space=vmem, size = 0x1000, scoped, tag = 'scratch operand']
  %s0 = inlined_call_operand.hbm [shape: f32[16,128], index: 0, kind: input, shape index: {}]
  %s1 = inlined_call_operand.hbm [shape: f32[2,128,512], index: 1, kind: input, shape index: {}]
  %s2 = inlined_call_operand.hbm [shape: f32[512,128], index: 2, kind: input, shape index: {}]
  %s3 = inlined_call_operand.hbm [shape: f32[16,128], index: 3, kind: output, shape index: {}]
  %s4 = sld [smem:[#allocation0]]
  $region65: #{tpu_custom_call.1} parent=0
    _
  %s6 = ssub.s32 1, %s4
  %s7 = scalar_select 0, %s6, %s4
  $region1: #{tpu_custom_call.1} parent=0
    #allocation3 [shape = 'u8[8192]{0}', space=vmem, size = 0x2000, scoped, tag = 'input window, operand 0']
    #allocation4 [shape = 's32[2]{0}', space=sflag, size = 0x8, scoped, tag = 'scoped memory for tpu_custom_call.1']
    #allocation5 [shape = 's32[2]{0}', space=sflag, size = 0x8, scoped, tag = 'scoped memory for tpu_custom_call.1']
    #allocation6 [shape = 'u8[524288]{0}', space=vmem, size = 0x80000, scoped, tag = 'input window, operand 1']
    #allocation7 [shape = 's32[2]{0}', space=sflag, size = 0x8, scoped, tag = 'scoped memory for tpu_custom_call.1']
    #allocation8 [shape = 'u8[262144]{0}', space=vmem, size = 0x40000, scoped, tag = 'input window, operand 2']
    #allocation9 [shape = 'u8[8192]{0}', space=vmem, size = 0x2000, scoped, tag = 'output window, operand 0']
    %8 = vsyncpa [#allocation4], 0
    %s9 = scalar_lea.sflag [#allocation4], 1
    %10 = vsyncpa %s9, 0
    %11 = vsyncpa [#allocation7], 0
    %s12 = scalar_lea.sflag [#allocation7], 1
    %13 = vsyncpa %s12, 0
    %14 = vsyncpa [#allocation5], 0
    %s15 = scalar_lea.sflag [#allocation5], 1
    %16 = vsyncpa %s15, 0
    loop: start=0, step=1, limit=6
    $region2: #{tpu_custom_call.1} parent=1 // loop_pre_header
      _
    $region3: #{tpu_custom_call.1} parent=1 // loop_header
      %s18 = sphi 0, %s22
      %p19 = scmp.ge.s32.totalorder %s18, 6
      %s25 = sphi 0, %s37
      %s26 = sphi 0, %s33
      %s27 = sphi 0, %s25
      %s28 = sphi 0, %s26
      %s29 = sphi 0, %s27
      %s30 = sphi 0, %s28
      %s40 = sphi 0, %s42
      %s43 = sphi 0, %s40
      %s44 = sphi 0, %s43
      %s60 = sphi 0, %s44
      %s66 = sphi 0, %s68
      %s69 = sphi 0, %s66
      %s70 = sphi 0, %s69
      %s86 = sphi 0, %s70
      %s92 = sphi 0, %s94
      %s95 = sphi 0, %s92
      %s96 = sphi 0, %s95
      %s112 = sphi 0, %s96
      %s118 = sphi 0, %s120
      %s121 = sphi 0, %s118
      %s122 = sphi 0, %s121
      %s138 = sphi 0, %s122
    $region4: #{tpu_custom_call.1} parent=1 // loop_header_branch
      %21 = sbr.rel (%p19) target = $region8
    $region5: #{tpu_custom_call.1} parent=1 // loop_body
      %s23 = ssub.s32 %s18, 1
      %s24 = ssub.s32 %s18, 2
      %s31 = sadd.s32 1, %s26
      %p32 = scmp.ge.s32.totalorder %s31, 2
      %s33 = scalar_select %p32, 0, %s31
      %s34 = sadd.s32 1, %s25
      %s35 = scalar_select %p32, %s34, %s25
      %p36 = scmp.ge.s32.totalorder %s35, 2
      %s37 = scalar_select %p36, 0, %s35
      %s38 = ssub.s32 %s25, %s37
      %p39 = scmp.eq.s32.totalorder %s38, 0
      %s41 = sadd.s32 %s40, 1
      %s42 = scalar_select %p39, %s40, %s41
      %p45 = pneg %p39
      %p46 = scmp.eq.s32.totalorder %s18, 3
      %p47 = por %p45, %p46
      %p48 = scmp.ne.s32.totalorder %s40, %s43
      %p49 = scmp.eq.s32.totalorder %s18, 0
      %p50 = por %p48, %p49
      %p51 = scmp.ne.s32.totalorder %s40, %s43
      %p52 = scmp.eq.s32.totalorder %s23, 3
      %p53 = por %p51, %p52
      %p54 = scmp.ne.s32.totalorder %s43, %s44
      %p55 = scmp.eq.s32.totalorder %s23, 0
      %p56 = por %p54, %p55
      %p57 = scmp.ne.s32.totalorder %s43, %s44
      %p58 = scmp.eq.s32.totalorder %s24, 3
      %p59 = por %p57, %p58
      %p61 = scmp.ne.s32.totalorder %s44, %s60
      %p62 = scmp.eq.s32.totalorder %s24, 0
      %p63 = por %p61, %p62
      %s64 = ssub.s32 %s26, %s33
      %p65 = scmp.eq.s32.totalorder %s64, 0
      %s67 = sadd.s32 %s66, 1
      %s68 = scalar_select %p65, %s66, %s67
      %p71 = pneg %p65
      %p72 = scmp.eq.s32.totalorder %s18, 3
      %p73 = por %p71, %p72
      %p74 = scmp.ne.s32.totalorder %s66, %s69
      %p75 = scmp.eq.s32.totalorder %s18, 0
      %p76 = por %p74, %p75
      %p77 = scmp.ne.s32.totalorder %s66, %s69
      %p78 = scmp.eq.s32.totalorder %s23, 3
      %p79 = por %p77, %p78
      %p80 = scmp.ne.s32.totalorder %s69, %s70
      %p81 = scmp.eq.s32.totalorder %s23, 0
      %p82 = por %p80, %p81
      %p83 = scmp.ne.s32.totalorder %s69, %s70
      %p84 = scmp.eq.s32.totalorder %s24, 3
      %p85 = por %p83, %p84
      %p87 = scmp.ne.s32.totalorder %s70, %s86
      %p88 = scmp.eq.s32.totalorder %s24, 0
      %p89 = por %p87, %p88
      %s90 = ssub.s32 %s26, %s33
      %p91 = scmp.eq.s32.totalorder %s90, 0
      %s93 = sadd.s32 %s92, 1
      %s94 = scalar_select %p91, %s92, %s93
      %p97 = pneg %p91
      %p98 = scmp.eq.s32.totalorder %s18, 3
      %p99 = por %p97, %p98
      %p100 = scmp.ne.s32.totalorder %s92, %s95
      %p101 = scmp.eq.s32.totalorder %s18, 0
      %p102 = por %p100, %p101
      %p103 = scmp.ne.s32.totalorder %s92, %s95
      %p104 = scmp.eq.s32.totalorder %s23, 3
      %p105 = por %p103, %p104
      %p106 = scmp.ne.s32.totalorder %s95, %s96
      %p107 = scmp.eq.s32.totalorder %s23, 0
      %p108 = por %p106, %p107
      %p109 = scmp.ne.s32.totalorder %s95, %s96
      %p110 = scmp.eq.s32.totalorder %s24, 3
      %p111 = por %p109, %p110
      %p113 = scmp.ne.s32.totalorder %s96, %s112
      %p114 = scmp.eq.s32.totalorder %s24, 0
      %p115 = por %p113, %p114
      %s116 = ssub.s32 %s25, %s37
      %p117 = scmp.eq.s32.totalorder %s116, 0
      %s119 = sadd.s32 %s118, 1
      %s120 = scalar_select %p117, %s118, %s119
      %p123 = pneg %p117
      %p124 = scmp.eq.s32.totalorder %s18, 3
      %p125 = por %p123, %p124
      %p126 = scmp.ne.s32.totalorder %s118, %s121
      %p127 = scmp.eq.s32.totalorder %s18, 0
      %p128 = por %p126, %p127
      %p129 = scmp.ne.s32.totalorder %s118, %s121
      %p130 = scmp.eq.s32.totalorder %s23, 3
      %p131 = por %p129, %p130
      %p132 = scmp.ne.s32.totalorder %s121, %s122
      %p133 = scmp.eq.s32.totalorder %s23, 0
      %p134 = por %p132, %p133
      %p135 = scmp.ne.s32.totalorder %s121, %s122
      %p136 = scmp.eq.s32.totalorder %s24, 3
      %p137 = por %p135, %p136
      %p139 = scmp.ne.s32.totalorder %s122, %s138
      %p140 = scmp.eq.s32.totalorder %s24, 0
      %p141 = por %p139, %p140
      %p142 = scmp.le.s32.totalorder 1, %s18
      %p143 = scmp.lt.s32.totalorder %s18, 5
      %p144 = pnand %p142, %p143
      %p145 = pneg %p144
      // Predicated region
      $region9: #{tpu_custom_call.1} parent=5 // pred_check
        _
      $region10: #{tpu_custom_call.1} parent=5 // pred_check_branch
        %147 = sbr.rel (%p144) target = $region12
      $region11: #{tpu_custom_call.1} parent=5 // pred_region
        %s148 = ssub.s32 %s18, 1
      $region12: #{tpu_custom_call.1} parent=5 // pred_fallthru
        _
      %p149 = scmp.lt.s32.totalorder %s18, 4
      // Predicated region
      $region13: #{tpu_custom_call.1} parent=5 // pred_check
        %p150 = pneg %p149
      $region14: #{tpu_custom_call.1} parent=5 // pred_check_branch
        %152 = sbr.rel (%p150) target = $region16
      $region15: #{tpu_custom_call.1} parent=5 // pred_region
        // Predicated region
        $region17: #{tpu_custom_call.1} parent=15 // pred_check
          %p153 = pneg %p50
        $region18: #{tpu_custom_call.1} parent=15 // pred_check_branch
          %155 = sbr.rel (%p153) target = $region20
        $region19: #{tpu_custom_call.1} parent=15 // pred_region
          %s156 = sand.u32 %s40, 1
          %s157 = scalar_lea.sflag [#allocation4], %s156
          %s158 = sand.u32 %s40, 1
          %s159 = smul.addr %s158, 8
          %s160 = scalar_lea.vmem [#allocation3], %s159
          %162 = vsyncadd %s157, 0
          %s163 = smul.addr %s25, 8
          %s164 = scalar_lea.hbm %s0, %s163
          %s166 = sshll.u32 %s164, 4
          %s167 = int_to_ptr.hbm [resolvable:$true] %s166
          %s168 = sshll.u32 %s160, 4
          %s169 = int_to_ptr.vmem [resolvable:$true] %s168
          %171 = dma.hbm_to_vmem [thread:$0]  %s167, 128, %s169, %s157
        $region20: #{tpu_custom_call.1} parent=15 // pred_fallthru
          _
        // Predicated region
        $region21: #{tpu_custom_call.1} parent=15 // pred_check
          %p172 = pneg %p76
        $region22: #{tpu_custom_call.1} parent=15 // pred_check_branch
          %174 = sbr.rel (%p172) target = $region24
        $region23: #{tpu_custom_call.1} parent=15 // pred_region
          %s175 = sand.u32 %s18, 1
          %s176 = scalar_lea.sflag [#allocation7], %s175
          %s177 = sand.u32 %s66, 1
          %s178 = smul.addr %s177, 512
          %s179 = scalar_lea.vmem [#allocation6], %s178
          %181 = vsyncadd %s176, 0
          %s182 = smul.addr %s26, 64
          %s183 = smul.addr %s182, 8
          %s184 = scalar_lea.hbm %s1, %s183
          %s185 = sshll.u32 %s184, 4
          %s186 = int_to_ptr.hbm [resolvable:$true] %s185
          %s187 = sshll.u32 %s179, 4
          %s188 = int_to_ptr.vmem [resolvable:$true] %s187
          %193 = dma.hbm_to_vmem [thread:$0]  %s186, 8192, %s188, %s176, 512, 512, 32
        $region24: #{tpu_custom_call.1} parent=15 // pred_fallthru
          _
        // Predicated region
        $region25: #{tpu_custom_call.1} parent=15 // pred_check
          %p194 = pneg %p102
        $region26: #{tpu_custom_call.1} parent=15 // pred_check_branch
          %196 = sbr.rel (%p194) target = $region28
        $region27: #{tpu_custom_call.1} parent=15 // pred_region
          %s197 = sand.u32 %s18, 1
          %s198 = scalar_lea.sflag [#allocation7], %s197
          %s199 = sand.u32 %s92, 1
          %s200 = smul.addr %s199, 256
          %s201 = scalar_lea.vmem [#allocation8], %s200
          %s202 = smul.u32 32, %s26
          %204 = vsyncadd %s198, 0
          %s205 = smul.addr %s202, 8
          %s206 = scalar_lea.hbm %s2, %s205
          %s207 = sshll.u32 %s206, 4
          %s208 = int_to_ptr.hbm [resolvable:$true] %s207
          %s209 = sshll.u32 %s201, 4
          %s210 = int_to_ptr.vmem [resolvable:$true] %s209
          %215 = dma.hbm_to_vmem [thread:$0]  %s208, 4096, %s210, %s198, 128, 128, 8
        $region28: #{tpu_custom_call.1} parent=15 // pred_fallthru
          _
      $region16: #{tpu_custom_call.1} parent=5 // pred_fallthru
        _
      %p216 = scmp.le.s32.totalorder 1, %s18
      %p217 = scmp.lt.s32.totalorder %s18, 5
      %p218 = pnand %p216, %p217
      %p219 = pneg %p218
      // Predicated region
      $region29: #{tpu_custom_call.1} parent=5 // pred_check
        _
      $region30: #{tpu_custom_call.1} parent=5 // pred_check_branch
        %221 = sbr.rel (%p218) target = $region32
      $region31: #{tpu_custom_call.1} parent=5 // pred_region
        %s222 = ssub.s32 %s18, 1
        %s223 = sand.u32 %s43, 1
        %s224 = scalar_lea.sflag [#allocation4], %s223
        %s225 = sand.u32 %s43, 1
        %s226 = smul.addr %s225, 8
        %s227 = scalar_lea.vmem [#allocation3], %s226
        // Predicated region
        $region33: #{tpu_custom_call.1} parent=31 // pred_check
          %p228 = pneg %p56
        $region34: #{tpu_custom_call.1} parent=31 // pred_check_branch
          %230 = sbr.rel (%p228) target = $region36
        $region35: #{tpu_custom_call.1} parent=31 // pred_region
          %232 = dma.done %s224, 128
        $region36: #{tpu_custom_call.1} parent=31 // pred_fallthru
          _
        %s233 = sand.u32 %s23, 1
        %s234 = scalar_lea.sflag [#allocation7], %s233
        %s235 = sand.u32 %s69, 1
        %s236 = smul.addr %s235, 512
        %s237 = scalar_lea.vmem [#allocation6], %s236
        // Predicated region
        $region37: #{tpu_custom_call.1} parent=31 // pred_check
          %p238 = pneg %p82
        $region38: #{tpu_custom_call.1} parent=31 // pred_check_branch
          %240 = sbr.rel (%p238) target = $region40
        $region39: #{tpu_custom_call.1} parent=31 // pred_region
          %242 = dma.done %s234, 8192
        $region40: #{tpu_custom_call.1} parent=31 // pred_fallthru
          _
        %s243 = sand.u32 %s23, 1
        %s244 = scalar_lea.sflag [#allocation7], %s243
        %s245 = sand.u32 %s95, 1
        %s246 = smul.addr %s245, 256
        %s247 = scalar_lea.vmem [#allocation8], %s246
        // Predicated region
        $region41: #{tpu_custom_call.1} parent=31 // pred_check
          %p248 = pneg %p108
        $region42: #{tpu_custom_call.1} parent=31 // pred_check_branch
          %250 = sbr.rel (%p248) target = $region44
        $region43: #{tpu_custom_call.1} parent=31 // pred_region
          %252 = dma.done %s244, 4096
        $region44: #{tpu_custom_call.1} parent=31 // pred_fallthru
          _
        %s253 = sand.u32 %s43, 1
        %s254 = scalar_lea.sflag [#allocation4], %s253
        %s255 = sand.u32 %s43, 1
        %s256 = smul.addr %s255, 8
        %s257 = scalar_lea.vmem [#allocation3], %s256
        %p258 = pneg %p56
        %p259 = pneg %p53
        %s260 = sand.u32 %s23, 1
        %s261 = scalar_lea.sflag [#allocation7], %s260
        %s262 = sand.u32 %s69, 1
        %s263 = smul.addr %s262, 512
        %s264 = scalar_lea.vmem [#allocation6], %s263
        %p265 = pneg %p82
        %p266 = pneg %p79
        %s267 = sand.u32 %s23, 1
        %s268 = scalar_lea.sflag [#allocation7], %s267
        %s269 = sand.u32 %s95, 1
        %s270 = smul.addr %s269, 256
        %s271 = scalar_lea.vmem [#allocation8], %s270
        %p272 = pneg %p108
        %p273 = pneg %p105
        %p274 = pneg %p134
        %p275 = pneg %p131
        %s276 = sand.u32 %s121, 1
        %s277 = scalar_lea.sflag [#allocation5], %s276
        %s278 = sand.u32 %s121, 1
        %s279 = smul.addr %s278, 8
        %s280 = scalar_lea.vmem [#allocation9], %s279
        %s281 = smul.u32 32, %s28
        %p282 = scmp.eq.s32.totalorder %s28, 0
        // Predicated region
        $region45: #{tpu_custom_call.1} parent=31 // pred_check
          %p283 = pneg %p282
        $region46: #{tpu_custom_call.1} parent=31 // pred_check_branch
          %285 = sbr.rel (%p283) target = $region48
        $region47: #{tpu_custom_call.1} parent=31 // pred_region
          %286 = vst [vmem:[#allocation2] sm:$0xff] 0.0
        $region48: #{tpu_custom_call.1} parent=31 // pred_fallthru
          _
        %v287 = vld [vmem:[%s227] sm:$0xff]
        %v288 = vld [vmem:[%s237] sm:$0xff]
        %v289 = vld [vmem:[%s237 + $0x8] sm:$0xff]
        %v290 = vld [vmem:[%s237 + $0x10] sm:$0xff]
        %v291 = vld [vmem:[%s237 + $0x18] sm:$0xff]
        %v292 = vld [vmem:[%s237 + $0x20] sm:$0xff]
        %v293 = vld [vmem:[%s237 + $0x28] sm:$0xff]
        %v294 = vld [vmem:[%s237 + $0x30] sm:$0xff]
        %v295 = vld [vmem:[%s237 + $0x38] sm:$0xff]
        %v296 = vld [vmem:[%s237 + $0x40] sm:$0xff]
        %v297 = vld [vmem:[%s237 + $0x48] sm:$0xff]
        %v298 = vld [vmem:[%s237 + $0x50] sm:$0xff]
        %v299 = vld [vmem:[%s237 + $0x58] sm:$0xff]
        %v300 = vld [vmem:[%s237 + $0x60] sm:$0xff]
        %v301 = vld [vmem:[%s237 + $0x68] sm:$0xff]
        %v302 = vld [vmem:[%s237 + $0x70] sm:$0xff]
        %v303 = vld [vmem:[%s237 + $0x78] sm:$0xff]
        %v304 = vld [vmem:[%s237 + $0x80] sm:$0xff]
        %v305 = vld [vmem:[%s237 + $0x88] sm:$0xff]
        %v306 = vld [vmem:[%s237 + $0x90] sm:$0xff]
        %v307 = vld [vmem:[%s237 + $0x98] sm:$0xff]
        %v308 = vld [vmem:[%s237 + $0xa0] sm:$0xff]
        %v309 = vld [vmem:[%s237 + $0xa8] sm:$0xff]
        %v310 = vld [vmem:[%s237 + $0xb0] sm:$0xff]
        %v311 = vld [vmem:[%s237 + $0xb8] sm:$0xff]
        %v312 = vld [vmem:[%s237 + $0xc0] sm:$0xff]
        %v313 = vld [vmem:[%s237 + $0xc8] sm:$0xff]
        %v314 = vld [vmem:[%s237 + $0xd0] sm:$0xff]
        %v315 = vld [vmem:[%s237 + $0xd8] sm:$0xff]
        %v316 = vld [vmem:[%s237 + $0xe0] sm:$0xff]
        %v317 = vld [vmem:[%s237 + $0xe8] sm:$0xff]
        %v318 = vld [vmem:[%s237 + $0xf0] sm:$0xff]
        %v319 = vld [vmem:[%s237 + $0xf8] sm:$0xff]
        %v320 = vld [vmem:[%s237 + $0x100] sm:$0xff]
        %v321 = vld [vmem:[%s237 + $0x108] sm:$0xff]
        %v322 = vld [vmem:[%s237 + $0x110] sm:$0xff]
        %v323 = vld [vmem:[%s237 + $0x118] sm:$0xff]
        %v324 = vld [vmem:[%s237 + $0x120] sm:$0xff]
        %v325 = vld [vmem:[%s237 + $0x128] sm:$0xff]
        %v326 = vld [vmem:[%s237 + $0x130] sm:$0xff]
        %v327 = vld [vmem:[%s237 + $0x138] sm:$0xff]
        %v328 = vld [vmem:[%s237 + $0x140] sm:$0xff]
        %v329 = vld [vmem:[%s237 + $0x148] sm:$0xff]
        %v330 = vld [vmem:[%s237 + $0x150] sm:$0xff]
        %v331 = vld [vmem:[%s237 + $0x158] sm:$0xff]
        %v332 = vld [vmem:[%s237 + $0x160] sm:$0xff]
        %v333 = vld [vmem:[%s237 + $0x168] sm:$0xff]
        %v334 = vld [vmem:[%s237 + $0x170] sm:$0xff]
        %v335 = vld [vmem:[%s237 + $0x178] sm:$0xff]
        %v336 = vld [vmem:[%s237 + $0x180] sm:$0xff]
        %v337 = vld [vmem:[%s237 + $0x188] sm:$0xff]
        %v338 = vld [vmem:[%s237 + $0x190] sm:$0xff]
        %v339 = vld [vmem:[%s237 + $0x198] sm:$0xff]
        %v340 = vld [vmem:[%s237 + $0x1a0] sm:$0xff]
        %v341 = vld [vmem:[%s237 + $0x1a8] sm:$0xff]
        %v342 = vld [vmem:[%s237 + $0x1b0] sm:$0xff]
        %v343 = vld [vmem:[%s237 + $0x1b8] sm:$0xff]
        %v344 = vld [vmem:[%s237 + $0x1c0] sm:$0xff]
        %v345 = vld [vmem:[%s237 + $0x1c8] sm:$0xff]
        %v346 = vld [vmem:[%s237 + $0x1d0] sm:$0xff]
        %v347 = vld [vmem:[%s237 + $0x1d8] sm:$0xff]
        %v348 = vld [vmem:[%s237 + $0x1e0] sm:$0xff]
        %v349 = vld [vmem:[%s237 + $0x1e8] sm:$0xff]
        %v350 = vld [vmem:[%s237 + $0x1f0] sm:$0xff]
        %v351 = vld [vmem:[%s237 + $0x1f8] sm:$0xff]
        %352 = vmatpush.msra.mxu0 %v348
        %353 = vmatpush.msra.mxu0 %v344
        %354 = vmatpush.msra.mxu0 %v340
        %355 = vmatpush.msra.mxu0 %v336
        %356 = vmatpush.msra.mxu0 %v332
        %357 = vmatpush.msra.mxu0 %v328
        %358 = vmatpush.msra.mxu0 %v324
        %359 = vmatpush.msra.mxu0 %v320
        %360 = vmatpush.msra.mxu0 %v316
        %361 = vmatpush.msra.mxu0 %v312
        %362 = vmatpush.msra.mxu0 %v308
        %363 = vmatpush.msra.mxu0 %v304
        %364 = vmatpush.msra.mxu0 %v300
        %365 = vmatpush.msra.mxu0 %v296
        %366 = vmatpush.msra.mxu0 %v292
        %367 = vmatpush.msra.mxu0 %v288
        %368 = vmatmul.f32.gmra.mxu0 %v287
        %v369 = vpop.f32.mrf.mxu0
        %v370 = vadd.f32 0.0, %v369
        %371 = vdwg.mxu0
        %372 = vmatpush.msra.mxu0 %v349
        %373 = vmatpush.msra.mxu0 %v345
        %374 = vmatpush.msra.mxu0 %v341
        %375 = vmatpush.msra.mxu0 %v337
        %376 = vmatpush.msra.mxu0 %v333
        %377 = vmatpush.msra.mxu0 %v329
        %378 = vmatpush.msra.mxu0 %v325
        %379 = vmatpush.msra.mxu0 %v321
        %380 = vmatpush.msra.mxu0 %v317
        %381 = vmatpush.msra.mxu0 %v313
        %382 = vmatpush.msra.mxu0 %v309
        %383 = vmatpush.msra.mxu0 %v305
        %384 = vmatpush.msra.mxu0 %v301
        %385 = vmatpush.msra.mxu0 %v297
        %386 = vmatpush.msra.mxu0 %v293
        %387 = vmatpush.msra.mxu0 %v289
        %388 = vmatmul.f32.gmra.mxu0 %v287
        %v389 = vpop.f32.mrf.mxu0
        %v390 = vadd.f32 0.0, %v389
        %391 = vdwg.mxu0
        %392 = vmatpush.msra.mxu0 %v350
        %393 = vmatpush.msra.mxu0 %v346
        %394 = vmatpush.msra.mxu0 %v342
        %395 = vmatpush.msra.mxu0 %v338
        %396 = vmatpush.msra.mxu0 %v334
        %397 = vmatpush.msra.mxu0 %v330
        %398 = vmatpush.msra.mxu0 %v326
        %399 = vmatpush.msra.mxu0 %v322
        %400 = vmatpush.msra.mxu0 %v318
        %401 = vmatpush.msra.mxu0 %v314
        %402 = vmatpush.msra.mxu0 %v310
        %403 = vmatpush.msra.mxu0 %v306
        %404 = vmatpush.msra.mxu0 %v302
        %405 = vmatpush.msra.mxu0 %v298
        %406 = vmatpush.msra.mxu0 %v294
        %407 = vmatpush.msra.mxu0 %v290
        %408 = vmatmul.f32.gmra.mxu0 %v287
        %v409 = vpop.f32.mrf.mxu0
        %v410 = vadd.f32 0.0, %v409
        %411 = vdwg.mxu0
        %412 = vmatpush.msra.mxu0 %v351
        %413 = vmatpush.msra.mxu0 %v347
        %414 = vmatpush.msra.mxu0 %v343
        %415 = vmatpush.msra.mxu0 %v339
        %416 = vmatpush.msra.mxu0 %v335
        %417 = vmatpush.msra.mxu0 %v331
        %418 = vmatpush.msra.mxu0 %v327
        %419 = vmatpush.msra.mxu0 %v323
        %420 = vmatpush.msra.mxu0 %v319
        %421 = vmatpush.msra.mxu0 %v315
        %422 = vmatpush.msra.mxu0 %v311
        %423 = vmatpush.msra.mxu0 %v307
        %424 = vmatpush.msra.mxu0 %v303
        %425 = vmatpush.msra.mxu0 %v299
        %426 = vmatpush.msra.mxu0 %v295
        %427 = vmatpush.msra.mxu0 %v291
        %428 = vmatmul.f32.gmra.mxu0 %v287
        %v429 = vpop.f32.mrf.mxu0
        %v430 = vadd.f32 0.0, %v429
        %431 = vdwg.mxu0
        %v432 = vxor.u32 %v370, 2147483648
        %v433 = vxor.u32 %v390, 2147483648
        %v434 = vmul.f32 %v432, 1.442695
        %v435 = vpow.pop %v434
        %v436 = vmul.f32 %v433, 1.442695
        %v437 = vpow.pop %v436
        %v438 = vadd.f32 %v435, 1.0
        %v439 = vadd.f32 %v437, 1.0
        %v440 = vrcp.pop %v438
        %v441 = vmul.f32 %v438, %v440
        %v442 = vsub.f32 1.0, %v441
        %v443 = vmul.f32 %v440, %v442
        %v444 = vadd.f32 %v440, %v443
        %vm445 = vweird.f32 %v438
        %vm446 = vweird.f32 %v440
        %vm447 = vmor %vm445, %vm446
        %v448 = vsel %vm447, %v440, %v444
        %v449 = vand.u32 2147483647, %v438
        %vm450 = vcmp.eq.f32.partialorder %v449, 8.507059e+37
        %v451 = vand.u32 %v438, 2147483648
        %v452 = vor.u32 1.1754944e-38, %v451
        %v453 = vsel %vm450, %v452, %v448
        %v454 = vmul.f32 1.0, %v453
        %v455 = vrcp.pop %v439
        %v456 = vmul.f32 %v439, %v455
        %v457 = vsub.f32 1.0, %v456
        %v458 = vmul.f32 %v455, %v457
        %v459 = vadd.f32 %v455, %v458
        %vm460 = vweird.f32 %v439
        %vm461 = vweird.f32 %v455
        %vm462 = vmor %vm460, %vm461
        %v463 = vsel %vm462, %v455, %v459
        %v464 = vand.u32 2147483647, %v439
        %vm465 = vcmp.eq.f32.partialorder %v464, 8.507059e+37
        %v466 = vand.u32 %v439, 2147483648
        %v467 = vor.u32 1.1754944e-38, %v466
        %v468 = vsel %vm465, %v467, %v463
        %v469 = vmul.f32 1.0, %v468
        %v470 = vmul.f32 %v370, %v454
        %v471 = vmul.f32 %v390, %v469
        %v472 = vmul.f32 %v470, %v410
        %v473 = vmul.f32 %v471, %v430
        %v474 = vld [vmem:[#allocation2] sm:$0xff]
        %v475 = vld [vmem:[%s247] sm:$0xff]
        %v476 = vld [vmem:[%s247 + $0x8] sm:$0xff]
        %v477 = vld [vmem:[%s247 + $0x10] sm:$0xff]
        %v478 = vld [vmem:[%s247 + $0x18] sm:$0xff]
        %v479 = vld [vmem:[%s247 + $0x20] sm:$0xff]
        %v480 = vld [vmem:[%s247 + $0x28] sm:$0xff]
        %v481 = vld [vmem:[%s247 + $0x30] sm:$0xff]
        %v482 = vld [vmem:[%s247 + $0x38] sm:$0xff]
        %v483 = vld [vmem:[%s247 + $0x40] sm:$0xff]
        %v484 = vld [vmem:[%s247 + $0x48] sm:$0xff]
        %v485 = vld [vmem:[%s247 + $0x50] sm:$0xff]
        %v486 = vld [vmem:[%s247 + $0x58] sm:$0xff]
        %v487 = vld [vmem:[%s247 + $0x60] sm:$0xff]
        %v488 = vld [vmem:[%s247 + $0x68] sm:$0xff]
        %v489 = vld [vmem:[%s247 + $0x70] sm:$0xff]
        %v490 = vld [vmem:[%s247 + $0x78] sm:$0xff]
        %v491 = vld [vmem:[%s247 + $0x80] sm:$0xff]
        %v492 = vld [vmem:[%s247 + $0x88] sm:$0xff]
        %v493 = vld [vmem:[%s247 + $0x90] sm:$0xff]
        %v494 = vld [vmem:[%s247 + $0x98] sm:$0xff]
        %v495 = vld [vmem:[%s247 + $0xa0] sm:$0xff]
        %v496 = vld [vmem:[%s247 + $0xa8] sm:$0xff]
        %v497 = vld [vmem:[%s247 + $0xb0] sm:$0xff]
        %v498 = vld [vmem:[%s247 + $0xb8] sm:$0xff]
        %v499 = vld [vmem:[%s247 + $0xc0] sm:$0xff]
        %v500 = vld [vmem:[%s247 + $0xc8] sm:$0xff]
        %v501 = vld [vmem:[%s247 + $0xd0] sm:$0xff]
        %v502 = vld [vmem:[%s247 + $0xd8] sm:$0xff]
        %v503 = vld [vmem:[%s247 + $0xe0] sm:$0xff]
        %v504 = vld [vmem:[%s247 + $0xe8] sm:$0xff]
        %v505 = vld [vmem:[%s247 + $0xf0] sm:$0xff]
        %v506 = vld [vmem:[%s247 + $0xf8] sm:$0xff]
        %507 = vmatpush.msra.mxu0 %v490
        %508 = vmatpush.msra.mxu0 %v489
        %509 = vmatpush.msra.mxu0 %v488
        %510 = vmatpush.msra.mxu0 %v487
        %511 = vmatpush.msra.mxu0 %v486
        %512 = vmatpush.msra.mxu0 %v485
        %513 = vmatpush.msra.mxu0 %v484
        %514 = vmatpush.msra.mxu0 %v483
        %515 = vmatpush.msra.mxu0 %v482
        %516 = vmatpush.msra.mxu0 %v481
        %517 = vmatpush.msra.mxu0 %v480
        %518 = vmatpush.msra.mxu0 %v479
        %519 = vmatpush.msra.mxu0 %v478
        %520 = vmatpush.msra.mxu0 %v477
        %521 = vmatpush.msra.mxu0 %v476
        %522 = vmatpush.msra.mxu0 %v475
        %523 = vmatmul.f32.gmra.mxu0 %v472
        %v524 = vpop.f32.mrf.mxu0
        %v525 = vadd.f32 0.0, %v524
        %526 = vdwg.mxu0
        %527 = vmatpush.msra.mxu0 %v506
        %528 = vmatpush.msra.mxu0 %v505
        %529 = vmatpush.msra.mxu0 %v504
        %530 = vmatpush.msra.mxu0 %v503
        %531 = vmatpush.msra.mxu0 %v502
        %532 = vmatpush.msra.mxu0 %v501
        %533 = vmatpush.msra.mxu0 %v500
        %534 = vmatpush.msra.mxu0 %v499
        %535 = vmatpush.msra.mxu0 %v498
        %536 = vmatpush.msra.mxu0 %v497
        %537 = vmatpush.msra.mxu0 %v496
        %538 = vmatpush.msra.mxu0 %v495
        %539 = vmatpush.msra.mxu0 %v494
        %540 = vmatpush.msra.mxu0 %v493
        %541 = vmatpush.msra.mxu0 %v492
        %542 = vmatpush.msra.mxu0 %v491
        %543 = vmatmul.f32.gmra.mxu0 %v473
        %v544 = vpop.f32.mrf.mxu0
        %v545 = vadd.f32 %v525, %v544
        %546 = vdwg.mxu0
        %v547 = vadd.f32 %v474, %v545
        %548 = vst [vmem:[#allocation2] sm:$0xff] %v547
        %p549 = scmp.eq.s32.totalorder %s28, 1
        // Predicated region
        $region49: #{tpu_custom_call.1} parent=31 // pred_check
          %p550 = pneg %p549
        $region50: #{tpu_custom_call.1} parent=31 // pred_check_branch
          %552 = sbr.rel (%p550) target = $region52
        $region51: #{tpu_custom_call.1} parent=31 // pred_region
          %v553 = vld [vmem:[#allocation2] sm:$0xff]
          %554 = vst [vmem:[%s280] sm:$0xff] %v553
        $region52: #{tpu_custom_call.1} parent=31 // pred_fallthru
          _
        %s555 = sand.u32 %s121, 1
        %s556 = scalar_lea.sflag [#allocation5], %s555
        %s557 = sand.u32 %s121, 1
        %s558 = smul.addr %s557, 8
        %s559 = scalar_lea.vmem [#allocation9], %s558
        // Predicated region
        $region53: #{tpu_custom_call.1} parent=31 // pred_check
          %p560 = pneg %p131
        $region54: #{tpu_custom_call.1} parent=31 // pred_check_branch
          %562 = sbr.rel (%p560) target = $region56
        $region55: #{tpu_custom_call.1} parent=31 // pred_region
          %564 = vsyncadd %s556, 0
          %s565 = smul.addr %s27, 8
          %s566 = scalar_lea.hbm %s3, %s565
          %s568 = sshll.u32 %s559, 4
          %s569 = int_to_ptr.vmem [resolvable:$true] %s568
          %s570 = sshll.u32 %s566, 4
          %s571 = int_to_ptr.hbm [resolvable:$true] %s570
          %573 = dma.vmem_to_hbm [thread:$0]  %s569, 128, %s571, %s556
        $region56: #{tpu_custom_call.1} parent=31 // pred_fallthru
          _
      $region32: #{tpu_custom_call.1} parent=5 // pred_fallthru
        _
      %p574 = scmp.le.s32.totalorder 2, %s18
      // Predicated region
      $region57: #{tpu_custom_call.1} parent=5 // pred_check
        %p575 = pneg %p574
      $region58: #{tpu_custom_call.1} parent=5 // pred_check_branch
        %577 = sbr.rel (%p575) target = $region60
      $region59: #{tpu_custom_call.1} parent=5 // pred_region
        %s578 = ssub.s32 %s18, 2
        // Predicated region
        $region61: #{tpu_custom_call.1} parent=59 // pred_check
          %p579 = pneg %p137
        $region62: #{tpu_custom_call.1} parent=59 // pred_check_branch
          %581 = sbr.rel (%p579) target = $region64
        $region63: #{tpu_custom_call.1} parent=59 // pred_region
          %s582 = sand.u32 %s122, 1
          %s583 = scalar_lea.sflag [#allocation5], %s582
          %s584 = sand.u32 %s122, 1
          %s585 = smul.addr %s584, 8
          %s586 = scalar_lea.vmem [#allocation9], %s585
          %588 = dma.done %s583, 128
        $region64: #{tpu_custom_call.1} parent=59 // pred_fallthru
          _
      $region60: #{tpu_custom_call.1} parent=5 // pred_fallthru
        _
    $region6: #{tpu_custom_call.1} parent=1 // loop_footer
      %s22 = sadd.s32 1, %s18
    $region7: #{tpu_custom_call.1} parent=1 // loop_footer_branch
      %17 = sbr.rel target = $region3
    $region8: #{tpu_custom_call.1} parent=1 // loop_exit
      _
    %589 = vsyncpa [#allocation4], 1
    %s590 = scalar_lea.sflag [#allocation4], 1
    %591 = vsyncpa %s590, 1
    %592 = vsyncpa [#allocation7], 1
    %s593 = scalar_lea.sflag [#allocation7], 1
    %594 = vsyncpa %s593, 1
    %595 = vsyncpa [#allocation5], 1
    %s596 = scalar_lea.sflag [#allocation5], 1
    %597 = vsyncpa %s596, 1

</llo_original>
